<compile_context>
chip_gen: v5e
topology: v5e:2x2
jax: 0.10.0
libtpu: 0.0.40
codegen_flags: <defaults>
</compile_context>

<pallas_src>
import functools

import jax
import jax.numpy as jnp
from jax.experimental import pallas as pl
from jax.experimental.pallas import tpu as pltpu


_LANES = 128
_SUBLANES = 8


def _target_block_bytes():
    """Per-input VMEM block byte target (chip-aware where the query works)."""
    try:
        info = pltpu.get_tpu_info()
        vmem = int(getattr(info, "vmem_capacity_bytes", 128 << 20))
    except Exception:
        vmem = 128 << 20
    # v7x: 64 MiB VMEM/TC but ~3.2 TB/s HBM -> per-step fixed overhead hurts
    # most, so go larger.  v5e/v6e (128 MiB VMEM): 4 MiB keeps
    # 2 inputs x 2 buffers at 16 MiB, well inside the explicit 48 MiB limit.
    if vmem <= (64 << 20):
        return 6 << 20
    return 4 << 20


def _choose_tile_rows(rows, c, itemsize, target_bytes, batch):
    """Rows-of-128-lanes per block: a multiple of 8 dividing `rows` (or rows itself)."""
    if rows <= _SUBLANES:
        return rows
    s_cap = max(_SUBLANES, target_bytes // (c * _LANES * itemsize))
    s = min(rows, (s_cap // _SUBLANES) * _SUBLANES)
    s = (s // _SUBLANES) * _SUBLANES
    while s >= _SUBLANES:
        if rows % s == 0:
            break
        s -= _SUBLANES
    else:
        return rows  # no multiple-of-8 divisor; full extent is always a legal block
    # Prefer >= 8 grid steps total so the ("parallel","parallel") grid
    # load-balances across v7x's two TensorCores (only kicks in for tiny work).
    while batch * (rows // s) < 8 and s >= 16 and s % 16 == 0 and rows % (s // 2) == 0:
        s //= 2
    return s


def _make_kernel(norm, apply_sigmoid, min_visibility, ignore_index, num_channels):
    """Builds the Pallas kernel body with static (Python-level) config."""
    use_vis = min_visibility > 0
    use_ignore = ignore_index is not None

    def _loss_and_target(pred_ref, tgt_ref):
        p = pred_ref[...].astype(jnp.float32)          # (1, C, S, 128)
        if apply_sigmoid:                              # key == 'center'
            p = jax.nn.sigmoid(p)
        t = tgt_ref[...].astype(jnp.float32)           # (1, C, S, 128)
        d = p - t
        loss = jnp.abs(d) if norm == 1 else d * d      # l1 / mse, reduction='none'
        return loss, t

    if use_vis and use_ignore:
        def kernel(pred_ref, tgt_ref, vis_ref, o_ref):
            loss, t = _loss_and_target(pred_ref, tgt_ref)
            vmask = (vis_ref[...] >= min_visibility).astype(jnp.float32)  # (1,1,S,128)
            imask = (t != ignore_index).astype(jnp.float32)               # (1,C,S,128)
            mask = imask * vmask                                          # bcast over C
            o_ref[0, 0, 0:1, :] = jnp.sum(loss * mask, axis=(1, 2))       # (1,128)
            o_ref[0, 0, 1:2, :] = jnp.sum(mask, axis=(1, 2))
    elif use_vis:
        def kernel(pred_ref, tgt_ref, vis_ref, o_ref):
            loss, _ = _loss_and_target(pred_ref, tgt_ref)
            vmask = (vis_ref[...] >= min_visibility).astype(jnp.float32)  # (1,1,S,128)
            o_ref[0, 0, 0:1, :] = jnp.sum(loss * vmask, axis=(1, 2))
            # mask == vis_mask broadcast over C  =>  sum(mask) == C * sum(vis_mask)
            o_ref[0, 0, 1:2, :] = (jnp.float32(num_channels)
                                   * jnp.sum(vmask, axis=(1, 2)))
    elif use_ignore:
        def kernel(pred_ref, tgt_ref, o_ref):
            loss, t = _loss_and_target(pred_ref, tgt_ref)
            mask = (t != ignore_index).astype(jnp.float32)
            o_ref[0, 0, 0:1, :] = jnp.sum(loss * mask, axis=(1, 2))
            o_ref[0, 0, 1:2, :] = jnp.sum(mask, axis=(1, 2))
    else:
        def kernel(pred_ref, tgt_ref, o_ref):
            loss, _ = _loss_and_target(pred_ref, tgt_ref)
            o_ref[0, 0, 0:1, :] = jnp.sum(loss, axis=(1, 2))

    return kernel, use_vis, use_ignore


def spatial_regression_loss(prediction, target, visibility=None, *, norm,
                            key='', min_visibility=0, ignore_index=None,
                            eps=1e-6):
    """JAX/Pallas equivalent of SpatialRegressionLoss.forward (pred_mask=None)."""
    assert prediction.ndim == 4, 'Must be a 4D tensor'
    assert norm in (1, 2), f'Expected norm 1 or 2, but got norm={norm}'
    B, C, H, W = prediction.shape
    HW = H * W
    apply_sigmoid = (key == 'center')

    kernel, use_vis, use_ignore = _make_kernel(
        norm, apply_sigmoid, min_visibility, ignore_index, C)
    need_msum = use_vis or use_ignore

    # ---- Lane-dense padded layout: (B, C, R, 128), R a multiple of 8 when R > 8.
    pad = (-HW) % _LANES
    rows = (HW + pad) // _LANES
    if rows > _SUBLANES and rows % _SUBLANES != 0:
        pad += ((-rows) % _SUBLANES) * _LANES
        rows = (HW + pad) // _LANES

    pred_pad_val = 0.0
    if use_ignore:
        tgt_pad_val = float(ignore_index)      # padded mask == 0
    elif apply_sigmoid:
        tgt_pad_val = 0.5                      # sigmoid(0) -> padded loss == 0
    else:
        tgt_pad_val = 0.0                      # padded loss == 0

    pred2 = prediction.reshape(B, C, HW)
    tgt2 = target.reshape(B, C, HW)
    if pad:
        pred2 = jnp.pad(pred2, ((0, 0), (0, 0), (0, pad)),
                        constant_values=pred_pad_val)
        tgt2 = jnp.pad(tgt2, ((0, 0), (0, 0), (0, pad)),
                       constant_values=tgt_pad_val)
    pred4 = pred2.reshape(B, C, rows, _LANES)
    tgt4 = tgt2.reshape(B, C, rows, _LANES)

    itemsize = jnp.dtype(prediction.dtype).itemsize
    tile_rows = _choose_tile_rows(rows, C, itemsize, _target_block_bytes(), B)
    n_tiles = rows // tile_rows

    in_arrays = [pred4, tgt4]
    in_specs = [
        pl.BlockSpec((1, C, tile_rows, _LANES), lambda b, t: (b, 0, t, 0)),
        pl.BlockSpec((1, C, tile_rows, _LANES), lambda b, t: (b, 0, t, 0)),
    ]
    bytes_accessed = (pred4.size * itemsize
                      + tgt4.size * jnp.dtype(target.dtype).itemsize)

    if use_vis:
        assert visibility is not None, 'visibility required when min_visibility > 0'
        vis2 = visibility.reshape(B, 1, HW)
        if pad:
            vis2 = jnp.pad(vis2, ((0, 0), (0, 0), (0, pad)), constant_values=0)
        vis4 = vis2.reshape(B, 1, rows, _LANES)
        in_arrays.append(vis4)
        in_specs.append(
            pl.BlockSpec((1, 1, tile_rows, _LANES), lambda b, t: (b, 0, t, 0)))
        bytes_accessed += vis4.size * jnp.dtype(visibility.dtype).itemsize

    n_rows_out = 2 if need_msum else 1
    out_shape = jax.ShapeDtypeStruct((B, n_tiles, n_rows_out, _LANES), jnp.float32)
    out_spec = pl.BlockSpec((1, 1, n_rows_out, _LANES), lambda b, t: (b, t, 0, 0))
    bytes_accessed += B * n_tiles * n_rows_out * _LANES * 4

    cost = pl.CostEstimate(
        flops=5 * B * C * rows * _LANES,
        transcendentals=B * C * rows * _LANES if apply_sigmoid else 0,
        bytes_accessed=int(bytes_accessed),
    )

    partials = pl.pallas_call(
        kernel,
        out_shape=out_shape,
        grid_spec=pltpu.PrefetchScalarGridSpec(
            num_scalar_prefetch=0,
            grid=(B, n_tiles),
            in_specs=in_specs,
            out_specs=out_spec,
        ),
        compiler_params=pltpu.CompilerParams(
            dimension_semantics=("parallel", "parallel"),
            vmem_limit_bytes=48 << 20),
        cost_estimate=cost,
    )(*in_arrays)

    lsum = jnp.sum(partials[:, :, 0, :])
    if need_msum:
        msum = jnp.sum(partials[:, :, 1, :])
    else:
        # mask is all-ones over the ORIGINAL (un-padded) extent in the unmasked path.
        msum = jnp.float32(B * C * HW)
    return lsum / (msum + eps)


def _reference(prediction, target, visibility, *, norm, key, min_visibility,
               ignore_index, eps=1e-6):
    """Pure-JAX reference mirroring the PyTorch forward (pred_mask=None)."""
    p = prediction.astype(jnp.float32)
    if key == 'center':
        p = jax.nn.sigmoid(p)
    t = target.astype(jnp.float32)
    loss = jnp.abs(p - t) if norm == 1 else (p - t) ** 2
    mask = jnp.ones_like(loss)
    if min_visibility > 0:
        vis_mask = (visibility >= min_visibility).astype(jnp.float32)[:, None]
        mask = mask * vis_mask
    if ignore_index is not None:
        mask = mask * (t != ignore_index).astype(jnp.float32)
    return (loss * mask).sum() / (mask.sum() + eps)


if __name__ == "__main__":
    shapes = [
        (2, 4, 16, 16),   # 128-aligned spatial extent
        (2, 3, 10, 10),   # non-128-aligned -> exercises the zero-padding path
    ]
    for (B, C, H, W) in shapes:
        k = jax.random.fold_in(jax.random.PRNGKey(0), B * 1000 + C * 100 + H)
        k_pred, k_tgt, k_vis = jax.random.split(k, 3)
        prediction = jax.random.normal(k_pred, (B, C, H, W), dtype=jnp.float32)
        target = jax.random.uniform(k_tgt, (B, C, H, W), dtype=jnp.float32)
        visibility = jax.random.randint(k_vis, (B, H, W), 0, 4, dtype=jnp.int32)
        target_q = jnp.round(target * 3.0)   # exact zeros -> exercises ignore_index

        configs = [
            # (norm, key, min_visibility, ignore_index, target)
            (2, 'center', 2, None, target),      # sigmoid + visibility mask
            (1, '',       0, None, target),      # common unmasked path
            (2, '',       1, 0.0,  target_q),    # visibility + ignore_index
            (1, 'center', 0, None, target),      # sigmoid, unmasked (pad-critical)
        ]
        for norm, key_name, min_vis, ign, tgt in configs:
            loss_fn = functools.partial(
                spatial_regression_loss, norm=norm, key=key_name,
                min_visibility=min_vis, ignore_index=ign)
            out = jax.block_until_ready(jax.jit(loss_fn)(prediction, tgt, visibility))
            ref = _reference(prediction, tgt, visibility, norm=norm, key=key_name,
                             min_visibility=min_vis, ignore_index=ign)
            assert jnp.allclose(out, ref, rtol=1e-5, atol=1e-6), (
                B, C, H, W, norm, key_name, min_vis, ign, float(out), float(ref))

    print("KERNEL_OK")
</pallas_src>

<mosaic_0001>
module attributes {stable_mosaic.version = 11 : i64} {
  func.func @kernel(%arg0: i32, %arg1: i32, %arg2: memref<1x4x2x128xf32, #tpu.memory_space<vmem>>, %arg3: memref<1x4x2x128xf32, #tpu.memory_space<vmem>>, %arg4: memref<1x1x2x128xi32, #tpu.memory_space<vmem>>, %arg5: memref<1x1x2x128xf32, #tpu.memory_space<vmem>>) attributes {dimension_semantics = [#tpu.dimension_semantics<parallel>, #tpu.dimension_semantics<parallel>], iteration_bounds = array<i64: 2, 1>, scalar_prefetch = 0 : i64, scratch_operands = 0 : i64, tpu.core_type = #tpu.core_type<tc>, window_params = [{transform_indices = @transform_0, window_bounds = array<i64: 1, 4, 2, 128>}, {transform_indices = @transform_1, window_bounds = array<i64: 1, 4, 2, 128>}, {transform_indices = @transform_2, window_bounds = array<i64: 1, 1, 2, 128>}, {transform_indices = @transform_3, window_bounds = array<i64: 1, 1, 2, 128>}]} {
    %c0 = arith.constant 0 : index
    %c0_0 = arith.constant 0 : index
    %c0_1 = arith.constant 0 : index
    %c0_2 = arith.constant 0 : index
    %0 = vector.load %arg2[%c0, %c0_0, %c0_1, %c0_2] : memref<1x4x2x128xf32, #tpu.memory_space<vmem>>, vector<1x4x2x128xf32>
    %1 = arith.negf %0 : vector<1x4x2x128xf32>
    %2 = math.exp %1 : vector<1x4x2x128xf32>
    %cst = arith.constant 1.000000e+00 : f32
    %3 = vector.broadcast %cst : f32 to vector<1x4x2x128xf32>
    %4 = arith.addf %3, %2 : vector<1x4x2x128xf32>
    %5 = arith.divf %3, %4 : vector<1x4x2x128xf32>
    %c0_3 = arith.constant 0 : index
    %c0_4 = arith.constant 0 : index
    %c0_5 = arith.constant 0 : index
    %c0_6 = arith.constant 0 : index
    %6 = vector.load %arg3[%c0_3, %c0_4, %c0_5, %c0_6] : memref<1x4x2x128xf32, #tpu.memory_space<vmem>>, vector<1x4x2x128xf32>
    %7 = arith.subf %5, %6 : vector<1x4x2x128xf32>
    %8 = arith.mulf %7, %7 : vector<1x4x2x128xf32>
    %c0_7 = arith.constant 0 : index
    %c0_8 = arith.constant 0 : index
    %c0_9 = arith.constant 0 : index
    %c0_10 = arith.constant 0 : index
    %9 = vector.load %arg4[%c0_7, %c0_8, %c0_9, %c0_10] : memref<1x1x2x128xi32, #tpu.memory_space<vmem>>, vector<1x1x2x128xi32>
    %c2_i32 = arith.constant 2 : i32
    %10 = vector.broadcast %c2_i32 : i32 to vector<1x1x2x128xi32>
    %11 = arith.cmpi sge, %9, %10 : vector<1x1x2x128xi32>
    %12 = arith.extui %11 : vector<1x1x2x128xi1> to vector<1x1x2x128xi32>
    %13 = arith.sitofp %12 : vector<1x1x2x128xi32> to vector<1x1x2x128xf32>
    %14 = vector.broadcast %13 : vector<1x1x2x128xf32> to vector<1x4x2x128xf32>
    %15 = arith.mulf %8, %14 : vector<1x4x2x128xf32>
    %cst_11 = arith.constant dense<0.000000e+00> : vector<1x128xf32>
    %16 = vector.multi_reduction <add>, %15, %cst_11 [1, 2] : vector<1x4x2x128xf32> to vector<1x128xf32>
    %c0_12 = arith.constant 0 : index
    %c0_13 = arith.constant 0 : index
    %c0_14 = arith.constant 0 : index
    %c0_15 = arith.constant 0 : index
    %17 = vector.load %arg5[%c0_12, %c0_13, %c0_14, %c0_15] : memref<1x1x2x128xf32, #tpu.memory_space<vmem>>, vector<1x1x1x128xf32>
    %18 = vector.shape_cast %17 : vector<1x1x1x128xf32> to vector<1x128xf32>
    %19 = vector.shape_cast %16 : vector<1x128xf32> to vector<1x1x1x128xf32>
    tpu.vector_store %arg5[%c0_12, %c0_13, %c0_14, %c0_15], %19 {strides = array<i32>} : memref<1x1x2x128xf32, #tpu.memory_space<vmem>>, vector<1x1x1x128xf32>,
    %cst_16 = arith.constant dense<0.000000e+00> : vector<1x128xf32>
    %20 = vector.multi_reduction <add>, %13, %cst_16 [1, 2] : vector<1x1x2x128xf32> to vector<1x128xf32>
    %cst_17 = arith.constant 4.000000e+00 : f32
    %21 = vector.broadcast %cst_17 : f32 to vector<1x128xf32>
    %22 = arith.mulf %21, %20 : vector<1x128xf32>
    %c0_18 = arith.constant 0 : index
    %c0_19 = arith.constant 0 : index
    %c1 = arith.constant 1 : index
    %c0_20 = arith.constant 0 : index
    %23 = vector.load %arg5[%c0_18, %c0_19, %c1, %c0_20] : memref<1x1x2x128xf32, #tpu.memory_space<vmem>>, vector<1x1x1x128xf32>
    %24 = vector.shape_cast %23 : vector<1x1x1x128xf32> to vector<1x128xf32>
    %25 = vector.shape_cast %22 : vector<1x128xf32> to vector<1x1x1x128xf32>
    tpu.vector_store %arg5[%c0_18, %c0_19, %c1, %c0_20], %25 {strides = array<i32>} : memref<1x1x2x128xf32, #tpu.memory_space<vmem>>, vector<1x1x1x128xf32>,
    return
  }
  func.func @transform_0(%arg0: i32, %arg1: i32) -> (i32, i32, i32, i32) {
    %c0_i32 = arith.constant 0 : i32
    %c0_i32_0 = arith.constant 0 : i32
    %c0_i32_1 = arith.constant 0 : i32
    return %arg0, %c0_i32, %arg1, %c0_i32_0 : i32, i32, i32, i32
  }
  func.func @transform_1(%arg0: i32, %arg1: i32) -> (i32, i32, i32, i32) {
    %c0_i32 = arith.constant 0 : i32
    %c0_i32_0 = arith.constant 0 : i32
    %c0_i32_1 = arith.constant 0 : i32
    return %arg0, %c0_i32, %arg1, %c0_i32_0 : i32, i32, i32, i32
  }
  func.func @transform_2(%arg0: i32, %arg1: i32) -> (i32, i32, i32, i32) {
    %c0_i32 = arith.constant 0 : i32
    %c0_i32_0 = arith.constant 0 : i32
    %c0_i32_1 = arith.constant 0 : i32
    return %arg0, %c0_i32, %arg1, %c0_i32_0 : i32, i32, i32, i32
  }
  func.func @transform_3(%arg0: i32, %arg1: i32) -> (i32, i32, i32, i32) {
    %c0_i32 = arith.constant 0 : i32
    %c0_i32_0 = arith.constant 0 : i32
    %c0_i32_1 = arith.constant 0 : i32
    return %arg0, %arg1, %c0_i32, %c0_i32_0 : i32, i32, i32, i32
  }
}

</mosaic_0001>

<llo_original>
// kernel: spatial_regression_loss.1
$region0: #{spatial_regression_loss.1}
  #allocation0 [shape = 'u32[]', space=smem, size = 0x4, offset = 0x4, fixed_abs, tag = 'smem constant byte address 0x4 - core index']
  #allocation1 [shape = 'u32[72,128]{1,0:T(1,128)}', space=vmem, size = 0x9000, scoped, tag = 'internal scratch']
  %s0 = inlined_call_operand.vmem [shape: f32[2,4,2,128], index: 0, kind: input, shape index: {}]
  %s1 = inlined_call_operand.vmem [shape: f32[2,4,2,128], index: 1, kind: input, shape index: {}]
  %s2 = inlined_call_operand.vmem [shape: s32[2,1,2,128], index: 2, kind: input, shape index: {}]
  %s3 = inlined_call_operand.vmem [shape: f32[2,1,2,128], index: 3, kind: output, shape index: {}]
  %s4 = sld [smem:[#allocation0]]
  $region45: #{spatial_regression_loss.1} parent=0
    _
  %s6 = ssub.s32 1, %s4
  %s7 = scalar_select 0, %s6, %s4
  loop: start=0, step=1, limit=4
  $region2: #{spatial_regression_loss.1} parent=0 // loop_pre_header
    _
  $region3: #{spatial_regression_loss.1} parent=0 // loop_header
    %s9 = sphi 0, %s13
    %p10 = scmp.ge.s32.totalorder %s9, 4
    %s16 = sphi 0, %s28
    %s17 = sphi 0, %s24
    %s18 = sphi 0, %s16
    %s19 = sphi 0, %s17
    %s20 = sphi 0, %s18
    %s21 = sphi 0, %s19
    %s33 = sphi 0, %s35
    %s36 = sphi 0, %s33
    %s37 = sphi 0, %s36
    %s53 = sphi 0, %s37
    %s61 = sphi 0, %s63
    %s64 = sphi 0, %s61
    %s65 = sphi 0, %s64
    %s81 = sphi 0, %s65
    %s89 = sphi 0, %s91
    %s92 = sphi 0, %s89
    %s93 = sphi 0, %s92
    %s109 = sphi 0, %s93
    %s117 = sphi 0, %s119
    %s120 = sphi 0, %s117
    %s121 = sphi 0, %s120
    %s137 = sphi 0, %s121
  $region4: #{spatial_regression_loss.1} parent=0 // loop_header_branch
    %12 = sbr.rel (%p10) target = $region8
  $region5: #{spatial_regression_loss.1} parent=0 // loop_body
    %s14 = ssub.s32 %s9, 1
    %s15 = ssub.s32 %s9, 2
    %s22 = sadd.s32 1, %s17
    %p23 = scmp.ge.s32.totalorder %s22, 1
    %s24 = scalar_select %p23, 0, %s22
    %s25 = sadd.s32 1, %s16
    %s26 = scalar_select %p23, %s25, %s16
    %p27 = scmp.ge.s32.totalorder %s26, 2
    %s28 = scalar_select %p27, 0, %s26
    %s29 = ssub.s32 %s16, %s28
    %s30 = ssub.s32 %s17, %s24
    %s31 = sor.u32 %s29, %s30
    %p32 = scmp.eq.s32.totalorder %s31, 0
    %s34 = sadd.s32 %s33, 1
    %s35 = scalar_select %p32, %s33, %s34
    %p38 = pneg %p32
    %p39 = scmp.eq.s32.totalorder %s9, 1
    %p40 = por %p38, %p39
    %p41 = scmp.ne.s32.totalorder %s33, %s36
    %p42 = scmp.eq.s32.totalorder %s9, 0
    %p43 = por %p41, %p42
    %p44 = scmp.ne.s32.totalorder %s33, %s36
    %p45 = scmp.eq.s32.totalorder %s14, 1
    %p46 = por %p44, %p45
    %p47 = scmp.ne.s32.totalorder %s36, %s37
    %p48 = scmp.eq.s32.totalorder %s14, 0
    %p49 = por %p47, %p48
    %p50 = scmp.ne.s32.totalorder %s36, %s37
    %p51 = scmp.eq.s32.totalorder %s15, 1
    %p52 = por %p50, %p51
    %p54 = scmp.ne.s32.totalorder %s37, %s53
    %p55 = scmp.eq.s32.totalorder %s15, 0
    %p56 = por %p54, %p55
    %s57 = ssub.s32 %s16, %s28
    %s58 = ssub.s32 %s17, %s24
    %s59 = sor.u32 %s57, %s58
    %p60 = scmp.eq.s32.totalorder %s59, 0
    %s62 = sadd.s32 %s61, 1
    %s63 = scalar_select %p60, %s61, %s62
    %p66 = pneg %p60
    %p67 = scmp.eq.s32.totalorder %s9, 1
    %p68 = por %p66, %p67
    %p69 = scmp.ne.s32.totalorder %s61, %s64
    %p70 = scmp.eq.s32.totalorder %s9, 0
    %p71 = por %p69, %p70
    %p72 = scmp.ne.s32.totalorder %s61, %s64
    %p73 = scmp.eq.s32.totalorder %s14, 1
    %p74 = por %p72, %p73
    %p75 = scmp.ne.s32.totalorder %s64, %s65
    %p76 = scmp.eq.s32.totalorder %s14, 0
    %p77 = por %p75, %p76
    %p78 = scmp.ne.s32.totalorder %s64, %s65
    %p79 = scmp.eq.s32.totalorder %s15, 1
    %p80 = por %p78, %p79
    %p82 = scmp.ne.s32.totalorder %s65, %s81
    %p83 = scmp.eq.s32.totalorder %s15, 0
    %p84 = por %p82, %p83
    %s85 = ssub.s32 %s16, %s28
    %s86 = ssub.s32 %s17, %s24
    %s87 = sor.u32 %s85, %s86
    %p88 = scmp.eq.s32.totalorder %s87, 0
    %s90 = sadd.s32 %s89, 1
    %s91 = scalar_select %p88, %s89, %s90
    %p94 = pneg %p88
    %p95 = scmp.eq.s32.totalorder %s9, 1
    %p96 = por %p94, %p95
    %p97 = scmp.ne.s32.totalorder %s89, %s92
    %p98 = scmp.eq.s32.totalorder %s9, 0
    %p99 = por %p97, %p98
    %p100 = scmp.ne.s32.totalorder %s89, %s92
    %p101 = scmp.eq.s32.totalorder %s14, 1
    %p102 = por %p100, %p101
    %p103 = scmp.ne.s32.totalorder %s92, %s93
    %p104 = scmp.eq.s32.totalorder %s14, 0
    %p105 = por %p103, %p104
    %p106 = scmp.ne.s32.totalorder %s92, %s93
    %p107 = scmp.eq.s32.totalorder %s15, 1
    %p108 = por %p106, %p107
    %p110 = scmp.ne.s32.totalorder %s93, %s109
    %p111 = scmp.eq.s32.totalorder %s15, 0
    %p112 = por %p110, %p111
    %s113 = ssub.s32 %s16, %s28
    %s114 = ssub.s32 %s17, %s24
    %s115 = sor.u32 %s113, %s114
    %p116 = scmp.eq.s32.totalorder %s115, 0
    %s118 = sadd.s32 %s117, 1
    %s119 = scalar_select %p116, %s117, %s118
    %p122 = pneg %p116
    %p123 = scmp.eq.s32.totalorder %s9, 1
    %p124 = por %p122, %p123
    %p125 = scmp.ne.s32.totalorder %s117, %s120
    %p126 = scmp.eq.s32.totalorder %s9, 0
    %p127 = por %p125, %p126
    %p128 = scmp.ne.s32.totalorder %s117, %s120
    %p129 = scmp.eq.s32.totalorder %s14, 1
    %p130 = por %p128, %p129
    %p131 = scmp.ne.s32.totalorder %s120, %s121
    %p132 = scmp.eq.s32.totalorder %s14, 0
    %p133 = por %p131, %p132
    %p134 = scmp.ne.s32.totalorder %s120, %s121
    %p135 = scmp.eq.s32.totalorder %s15, 1
    %p136 = por %p134, %p135
    %p138 = scmp.ne.s32.totalorder %s121, %s137
    %p139 = scmp.eq.s32.totalorder %s15, 0
    %p140 = por %p138, %p139
    %p141 = scmp.le.s32.totalorder 1, %s9
    %p142 = scmp.lt.s32.totalorder %s9, 3
    %p143 = pnand %p141, %p142
    %p144 = pneg %p143
    // Predicated region
    $region9: #{spatial_regression_loss.1} parent=5 // pred_check
      _
    $region10: #{spatial_regression_loss.1} parent=5 // pred_check_branch
      %146 = sbr.rel (%p143) target = $region12
    $region11: #{spatial_regression_loss.1} parent=5 // pred_region
      %s147 = ssub.s32 %s9, 1
    $region12: #{spatial_regression_loss.1} parent=5 // pred_fallthru
      _
    %p148 = scmp.lt.s32.totalorder %s9, 2
    // Predicated region
    $region13: #{spatial_regression_loss.1} parent=5 // pred_check
      %p149 = pneg %p148
    $region14: #{spatial_regression_loss.1} parent=5 // pred_check_branch
      %151 = sbr.rel (%p149) target = $region16
    $region15: #{spatial_regression_loss.1} parent=5 // pred_region
      // Predicated region
      $region17: #{spatial_regression_loss.1} parent=15 // pred_check
        %p152 = pneg %p43
      $region18: #{spatial_regression_loss.1} parent=15 // pred_check_branch
        %154 = sbr.rel (%p152) target = $region20
      $region19: #{spatial_regression_loss.1} parent=15 // pred_region
        %p155 = scmp.lt.s32.totalorder %s16, 1
        %s156 = scalar_select %p155, %s16, 1
        %p157 = scmp.lt.s32.totalorder %s17, 0
        %s158 = scalar_select %p157, %s17, 0
        %s159 = smul.addr %s156, 4
        %s160 = sadd.s32 %s158, %s159
        %s161 = smul.addr %s160, 2
        %s162 = scalar_lea.vmem %s0, %s161
      $region20: #{spatial_regression_loss.1} parent=15 // pred_fallthru
        _
      // Predicated region
      $region21: #{spatial_regression_loss.1} parent=15 // pred_check
        %p163 = pneg %p71
      $region22: #{spatial_regression_loss.1} parent=15 // pred_check_branch
        %165 = sbr.rel (%p163) target = $region24
      $region23: #{spatial_regression_loss.1} parent=15 // pred_region
        %p166 = scmp.lt.s32.totalorder %s16, 1
        %s167 = scalar_select %p166, %s16, 1
        %p168 = scmp.lt.s32.totalorder %s17, 0
        %s169 = scalar_select %p168, %s17, 0
        %s170 = smul.addr %s167, 4
        %s171 = sadd.s32 %s169, %s170
        %s172 = smul.addr %s171, 2
        %s173 = scalar_lea.vmem %s1, %s172
      $region24: #{spatial_regression_loss.1} parent=15 // pred_fallthru
        _
      // Predicated region
      $region25: #{spatial_regression_loss.1} parent=15 // pred_check
        %p174 = pneg %p99
      $region26: #{spatial_regression_loss.1} parent=15 // pred_check_branch
        %176 = sbr.rel (%p174) target = $region28
      $region27: #{spatial_regression_loss.1} parent=15 // pred_region
        %p177 = scmp.lt.s32.totalorder %s16, 1
        %s178 = scalar_select %p177, %s16, 1
        %p179 = scmp.lt.s32.totalorder %s17, 0
        %s180 = scalar_select %p179, %s17, 0
        %s181 = sadd.s32 %s180, %s178
        %s182 = smul.addr %s181, 2
        %s183 = scalar_lea.vmem %s2, %s182
      $region28: #{spatial_regression_loss.1} parent=15 // pred_fallthru
        _
    $region16: #{spatial_regression_loss.1} parent=5 // pred_fallthru
      _
    %p184 = scmp.le.s32.totalorder 1, %s9
    %p185 = scmp.lt.s32.totalorder %s9, 3
    %p186 = pnand %p184, %p185
    %p187 = pneg %p186
    // Predicated region
    $region29: #{spatial_regression_loss.1} parent=5 // pred_check
      _
    $region30: #{spatial_regression_loss.1} parent=5 // pred_check_branch
      %189 = sbr.rel (%p186) target = $region32
    $region31: #{spatial_regression_loss.1} parent=5 // pred_region
      %s190 = ssub.s32 %s9, 1
      %p191 = scmp.lt.s32.totalorder %s18, 1
      %s192 = scalar_select %p191, %s18, 1
      %p193 = scmp.lt.s32.totalorder %s19, 0
      %s194 = scalar_select %p193, %s19, 0
      %s195 = smul.addr %s192, 4
      %s196 = sadd.s32 %s194, %s195
      %s197 = smul.addr %s196, 2
      %s198 = scalar_lea.vmem %s0, %s197
      %p199 = pneg %p49
      %p200 = pneg %p46
      %p201 = scmp.lt.s32.totalorder %s18, 1
      %s202 = scalar_select %p201, %s18, 1
      %p203 = scmp.lt.s32.totalorder %s19, 0
      %s204 = scalar_select %p203, %s19, 0
      %s205 = smul.addr %s202, 4
      %s206 = sadd.s32 %s204, %s205
      %s207 = smul.addr %s206, 2
      %s208 = scalar_lea.vmem %s1, %s207
      %p209 = pneg %p77
      %p210 = pneg %p74
      %p211 = scmp.lt.s32.totalorder %s18, 1
      %s212 = scalar_select %p211, %s18, 1
      %p213 = scmp.lt.s32.totalorder %s19, 0
      %s214 = scalar_select %p213, %s19, 0
      %s215 = sadd.s32 %s214, %s212
      %s216 = smul.addr %s215, 2
      %s217 = scalar_lea.vmem %s2, %s216
      %p218 = pneg %p105
      %p219 = pneg %p102
      %p220 = pneg %p133
      %p221 = pneg %p130
      %p222 = scmp.lt.s32.totalorder %s18, 1
      %s223 = scalar_select %p222, %s18, 1
      %p224 = scmp.lt.s32.totalorder %s19, 0
      %s225 = scalar_select %p224, %s19, 0
      %s226 = sadd.s32 %s225, %s223
      %s227 = smul.addr %s226, 2
      %s228 = scalar_lea.vmem %s3, %s227
      %p229 = scmp.lt.s32.totalorder %s18, 1
      %s230 = scalar_select %p229, %s18, 1
      %p231 = scmp.lt.s32.totalorder %s19, 0
      %s232 = scalar_select %p231, %s19, 0
      %s233 = smul.addr %s230, 4
      %s234 = sadd.s32 %s232, %s233
      %s235 = smul.addr %s234, 2
      %s236 = scalar_lea.vmem %s0, %s235
      %p237 = scmp.lt.s32.totalorder %s18, 1
      %s238 = scalar_select %p237, %s18, 1
      %p239 = scmp.lt.s32.totalorder %s19, 0
      %s240 = scalar_select %p239, %s19, 0
      %s241 = smul.addr %s238, 4
      %s242 = sadd.s32 %s240, %s241
      %s243 = smul.addr %s242, 2
      %s244 = scalar_lea.vmem %s1, %s243
      %p245 = scmp.lt.s32.totalorder %s18, 1
      %s246 = scalar_select %p245, %s18, 1
      %p247 = scmp.lt.s32.totalorder %s19, 0
      %s248 = scalar_select %p247, %s19, 0
      %s249 = sadd.s32 %s248, %s246
      %s250 = smul.addr %s249, 2
      %s251 = scalar_lea.vmem %s2, %s250
      %p252 = scmp.lt.s32.totalorder %s18, 1
      %s253 = scalar_select %p252, %s18, 1
      %p254 = scmp.lt.s32.totalorder %s19, 0
      %s255 = scalar_select %p254, %s19, 0
      %s256 = sadd.s32 %s255, %s253
      %s257 = smul.addr %s256, 2
      %s258 = scalar_lea.vmem %s3, %s257
      %v259 = vld [vmem:[%s236] sm:$0x3]
      %v260 = vld [vmem:[%s236 + $0x2] sm:$0x3]
      %v261 = vld [vmem:[%s236 + $0x4] sm:$0x3]
      %v262 = vld [vmem:[%s236 + $0x6] sm:$0x3]
      %v263 = vxor.u32 %v259, 2147483648
      %v264 = vxor.u32 %v260, 2147483648
      %v265 = vxor.u32 %v261, 2147483648
      %v266 = vxor.u32 %v262, 2147483648
      %v267 = vmul.f32 %v263, 1.442695
      %v268 = vpow.pop %v267
      %v269 = vmul.f32 %v264, 1.442695
      %v270 = vpow.pop %v269
      %v271 = vmul.f32 %v265, 1.442695
      %v272 = vpow.pop %v271
      %v273 = vmul.f32 %v266, 1.442695
      %v274 = vpow.pop %v273
      %v275 = vadd.f32 %v268, 1.0
      %v276 = vadd.f32 %v270, 1.0
      %v277 = vadd.f32 %v272, 1.0
      %v278 = vadd.f32 %v274, 1.0
      %v279 = vrcp.pop %v275
      %v280 = vmul.f32 %v275, %v279
      %v281 = vsub.f32 1.0, %v280
      %v282 = vmul.f32 %v279, %v281
      %v283 = vadd.f32 %v279, %v282
      %vm284 = vweird.f32 %v275
      %vm285 = vweird.f32 %v279
      %vm286 = vmor %vm284, %vm285
      %v287 = vsel %vm286, %v279, %v283
      %v288 = vand.u32 2147483647, %v275
      %vm289 = vcmp.eq.f32.partialorder %v288, 8.507059e+37
      %v290 = vand.u32 %v275, 2147483648
      %v291 = vor.u32 1.1754944e-38, %v290
      %v292 = vsel %vm289, %v291, %v287
      %v293 = vmul.f32 1.0, %v292
      %v294 = vrcp.pop %v276
      %v295 = vmul.f32 %v276, %v294
      %v296 = vsub.f32 1.0, %v295
      %v297 = vmul.f32 %v294, %v296
      %v298 = vadd.f32 %v294, %v297
      %vm299 = vweird.f32 %v276
      %vm300 = vweird.f32 %v294
      %vm301 = vmor %vm299, %vm300
      %v302 = vsel %vm301, %v294, %v298
      %v303 = vand.u32 2147483647, %v276
      %vm304 = vcmp.eq.f32.partialorder %v303, 8.507059e+37
      %v305 = vand.u32 %v276, 2147483648
      %v306 = vor.u32 1.1754944e-38, %v305
      %v307 = vsel %vm304, %v306, %v302
      %v308 = vmul.f32 1.0, %v307
      %v309 = vrcp.pop %v277
      %v310 = vmul.f32 %v277, %v309
      %v311 = vsub.f32 1.0, %v310
      %v312 = vmul.f32 %v309, %v311
      %v313 = vadd.f32 %v309, %v312
      %vm314 = vweird.f32 %v277
      %vm315 = vweird.f32 %v309
      %vm316 = vmor %vm314, %vm315
      %v317 = vsel %vm316, %v309, %v313
      %v318 = vand.u32 2147483647, %v277
      %vm319 = vcmp.eq.f32.partialorder %v318, 8.507059e+37
      %v320 = vand.u32 %v277, 2147483648
      %v321 = vor.u32 1.1754944e-38, %v320
      %v322 = vsel %vm319, %v321, %v317
      %v323 = vmul.f32 1.0, %v322
      %v324 = vrcp.pop %v278
      %v325 = vmul.f32 %v278, %v324
      %v326 = vsub.f32 1.0, %v325
      %v327 = vmul.f32 %v324, %v326
      %v328 = vadd.f32 %v324, %v327
      %vm329 = vweird.f32 %v278
      %vm330 = vweird.f32 %v324
      %vm331 = vmor %vm329, %vm330
      %v332 = vsel %vm331, %v324, %v328
      %v333 = vand.u32 2147483647, %v278
      %vm334 = vcmp.eq.f32.partialorder %v333, 8.507059e+37
      %v335 = vand.u32 %v278, 2147483648
      %v336 = vor.u32 1.1754944e-38, %v335
      %v337 = vsel %vm334, %v336, %v332
      %v338 = vmul.f32 1.0, %v337
      %v339 = vld [vmem:[%s244] sm:$0x3]
      %v340 = vld [vmem:[%s244 + $0x2] sm:$0x3]
      %v341 = vld [vmem:[%s244 + $0x4] sm:$0x3]
      %v342 = vld [vmem:[%s244 + $0x6] sm:$0x3]
      %v343 = vsub.f32 %v293, %v339
      %v344 = vsub.f32 %v308, %v340
      %v345 = vsub.f32 %v323, %v341
      %v346 = vsub.f32 %v338, %v342
      %v347 = vmul.f32 %v343, %v343
      %v348 = vmul.f32 %v344, %v344
      %v349 = vmul.f32 %v345, %v345
      %v350 = vmul.f32 %v346, %v346
      %v351 = vld [vmem:[%s251] sm:$0x3]
      %vm352 = vcmp.ge.s32.totalorder %v351, 2
      %v353 = vsel %vm352, 1, 0
      %v354 = vcvt.s32.f32 %v353
      %v355 = vmul.f32 %v347, %v354
      %v356 = vmul.f32 %v348, %v354
      %v357 = vmul.f32 %v349, %v354
      %v358 = vmul.f32 %v350, %v354
      %vm359 = vcmask 1041408
      %v360 = vsel %vm359, %v355, 0.0
      %v361 = vsel %vm359, %v356, 0.0
      %v362 = vadd.f32 %v360, %v361
      %v363 = vsel %vm359, %v357, 0.0
      %v364 = vadd.f32 %v362, %v363
      %v365 = vsel %vm359, %v358, 0.0
      %v366 = vadd.f32 %v364, %v365
      %v367 = vrot.slane %v366, 4
      %v368 = vadd.f32 %v366, %v367
      %v369 = vrot.slane %v368, 2
      %v370 = vadd.f32 %v368, %v369
      %v371 = vrot.slane %v370, 1
      %v372 = vadd.f32 %v370, %v371
      %373 = vst [vmem:[%s258] sm:$0x1] %v372
      %v374 = vsel %vm359, %v354, 0.0
      %v375 = vrot.slane %v374, 4
      %v376 = vadd.f32 %v374, %v375
      %v377 = vrot.slane %v376, 2
      %v378 = vadd.f32 %v376, %v377
      %v379 = vrot.slane %v378, 1
      %v380 = vadd.f32 %v378, %v379
      %v381 = vmul.f32 %v380, 4.0
      %382 = vst [vmem:[%s258 + $0x1] sm:$0x1] %v381
      %p383 = scmp.lt.s32.totalorder %s18, 1
      %s384 = scalar_select %p383, %s18, 1
      %p385 = scmp.lt.s32.totalorder %s19, 0
      %s386 = scalar_select %p385, %s19, 0
      %s387 = sadd.s32 %s386, %s384
      %s388 = smul.addr %s387, 2
      %s389 = scalar_lea.vmem %s3, %s388
      // Predicated region
      $region33: #{spatial_regression_loss.1} parent=31 // pred_check
        %p390 = pneg %p130
      $region34: #{spatial_regression_loss.1} parent=31 // pred_check_branch
        %392 = sbr.rel (%p390) target = $region36
      $region35: #{spatial_regression_loss.1} parent=31 // pred_region
        _
      $region36: #{spatial_regression_loss.1} parent=31 // pred_fallthru
        _
    $region32: #{spatial_regression_loss.1} parent=5 // pred_fallthru
      _
    %p393 = scmp.le.s32.totalorder 2, %s9
    // Predicated region
    $region37: #{spatial_regression_loss.1} parent=5 // pred_check
      %p394 = pneg %p393
    $region38: #{spatial_regression_loss.1} parent=5 // pred_check_branch
      %396 = sbr.rel (%p394) target = $region40
    $region39: #{spatial_regression_loss.1} parent=5 // pred_region
      %s397 = ssub.s32 %s9, 2
      // Predicated region
      $region41: #{spatial_regression_loss.1} parent=39 // pred_check
        %p398 = pneg %p136
      $region42: #{spatial_regression_loss.1} parent=39 // pred_check_branch
        %400 = sbr.rel (%p398) target = $region44
      $region43: #{spatial_regression_loss.1} parent=39 // pred_region
        %p401 = scmp.lt.s32.totalorder %s20, 1
        %s402 = scalar_select %p401, %s20, 1
        %p403 = scmp.lt.s32.totalorder %s21, 0
        %s404 = scalar_select %p403, %s21, 0
        %s405 = sadd.s32 %s404, %s402
        %s406 = smul.addr %s405, 2
        %s407 = scalar_lea.vmem %s3, %s406
      $region44: #{spatial_regression_loss.1} parent=39 // pred_fallthru
        _
    $region40: #{spatial_regression_loss.1} parent=5 // pred_fallthru
      _
  $region6: #{spatial_regression_loss.1} parent=0 // loop_footer
    %s13 = sadd.s32 1, %s9
  $region7: #{spatial_regression_loss.1} parent=0 // loop_footer_branch
    %8 = sbr.rel target = $region3
  $region8: #{spatial_regression_loss.1} parent=0 // loop_exit
    _

</llo_original>
